<compile_context>
chip_gen: v7x
topology: tpu7x:2x2x1
jax: 0.10.0
libtpu: 0.0.40
codegen_flags: <defaults>
</compile_context>

<pallas_src>
import numpy as np
import jax
import jax.numpy as jnp
from jax import lax
from jax.experimental import pallas as pl
from jax.experimental.pallas import tpu as pltpu

# ---- problem configuration (consistent with the nn.Module) ----
B = 2            # batch
C_IN = 4         # in_channels
C_OUT = 8        # out_channels (!= in_channels so the downsample path is exercised)
L = 16           # sequence length
K = 3            # kernel_size
STRIDE = 1
DIL = 2          # dilation
PAD = (K - 1) * DIL                                    # classic TCN padding = 4
L1 = (L + 2 * PAD - DIL * (K - 1) - 1) // STRIDE + 1   # length after conv1 = 20
L2 = (L1 + 2 * PAD - DIL * (K - 1) - 1) // STRIDE + 1  # length after conv2 = 24

# ---- lane-packing layout: each sample owns a SEG-lane slot, 128 // SEG samples / tile ----
SEG = 32                      # lanes per sample (4-lane guard + data + slack)
C_IN_P = 8                    # input channels padded to a full sublane tile
ONES_CH = C_IN                # spare padded channel held at 1.0 -> conv1/downsample biases via MXU
B_PAD = ((B + (128 // SEG) - 1) // (128 // SEG)) * (128 // SEG)   # batch rounded to full lane tiles
NLANE = B_PAD * SEG           # 128 (lane-dense, unmasked vst)
P_ROWS = 3 * C_OUT            # 16 rows conv1+downsample, 8 rows conv2
P_COLS = C_IN_P * (K + 1)     # 32 (also holds conv2's 24 taps + folded b2)

# Layout safety (perf-review correctness note): in-register lane shifts must never leak
# real data across sample segments and every conv2 tap read must stay inside a segment.
assert 128 % SEG == 0 and NLANE % 128 == 0
assert C_IN < C_IN_P                      # need a spare channel for the ones row
assert PAD + L + PAD <= SEG               # input + both zero pads fit (trailing gap >= max shift)
assert PAD + L1 <= SEG                    # conv1 outputs fit inside the segment
assert L2 + (K - 1) * DIL <= SEG          # conv2's furthest tap read stays inside the segment
assert L2 <= SEG
assert K * C_OUT + 1 <= P_COLS            # conv2 taps + folded bias fit in the packed slab


def temporal_block_kernel(x_ref, p_ref, out_ref):
    xs = x_ref[...]                                      # (C_IN_P, NLANE)
    w1c = p_ref[0:2 * C_OUT, :]                          # (16, 32) conv1 taps + downsample (+ b1/bds)
    w2c = p_ref[2 * C_OUT:3 * C_OUT, :]                  # (8, 32)  conv2 taps (+ b2)

    # lane index within each SEG-lane sample segment
    lane = lax.broadcasted_iota(jnp.int32, (1, NLANE), 1) % SEG
    mask1 = (lane >= PAD) & (lane < PAD + L1)            # valid conv1-output lanes
    maskr = lane < L                                     # valid residual lanes
    ones_blk = jnp.where(                                # row 0 = 1.0 -> b2 comes out of the MXU
        lax.broadcasted_iota(jnp.int32, (C_OUT, NLANE), 0) == 0, 1.0, 0.0)

    def rshift(a, s):
        # out[:, i] = a[:, i - s] (cyclic over the slab; per-segment slack / masks absorb the wrap)
        s = s % NLANE
        return pltpu.roll(a, s, axis=1) if s else a

    # im2col for conv1 (K dilated taps) + the 1x1 downsample over the same slab -> ONE MXU op.
    # conv1 output j lands at lane PAD + j; residual output j lands at lane j.
    im1 = jnp.concatenate([rshift(xs, PAD - t * DIL) for t in range(K)]
                          + [rshift(xs, -PAD)], axis=0)                    # (32, NLANE)
    raw1 = jnp.dot(w1c, im1, preferred_element_type=jnp.float32)           # (16, NLANE), biases folded

    # conv1 -> ReLU -> dropout(identity); zero outside the valid window so the slab directly
    # doubles as conv2's zero-padded input.  Residual is right-zero-padded (== F.pad(res, (0, L2-L))).
    out1 = jnp.where(mask1, jnp.maximum(raw1[:C_OUT], 0.0), 0.0)
    res = jnp.where(maskr, raw1[C_OUT:], 0.0)

    # im2col for conv2 over the already-padded out1 slab (+ ones row for b2) -> ONE MXU op.
    im2 = jnp.concatenate([rshift(out1, -t * DIL) for t in range(K)]
                          + [ones_blk], axis=0)                            # (32, NLANE)
    raw2 = jnp.dot(w2c, im2, preferred_element_type=jnp.float32)           # (8, NLANE), b2 folded
    out2 = jnp.maximum(raw2, 0.0)                        # conv2 -> ReLU -> dropout(identity)

    out_ref[...] = jnp.maximum(out2 + res, 0.0)          # final ReLU(out + res)


def pack_params(w1, b1, w2, b2, wds, bds):
    """Host-side (numpy), once-per-parameter-update packing of all weights+biases into one slab."""
    w1 = np.asarray(w1, np.float32); w2 = np.asarray(w2, np.float32)
    wds = np.asarray(wds, np.float32)
    p = np.zeros((P_ROWS, P_COLS), np.float32)
    for t in range(K):
        p[:C_OUT, t * C_IN_P: t * C_IN_P + C_IN] = w1[:, :, t]             # conv1 dilated taps
        p[2 * C_OUT:, t * C_OUT: (t + 1) * C_OUT] = w2[:, :, t]            # conv2 dilated taps
    p[:C_OUT, (K - 1) * C_IN_P + ONES_CH] = np.asarray(b1, np.float32)     # b1 via ones channel
    p[C_OUT:2 * C_OUT, K * C_IN_P: K * C_IN_P + C_IN] = wds                # 1x1 downsample
    p[C_OUT:2 * C_OUT, K * C_IN_P + ONES_CH] = np.asarray(bds, np.float32) # bds via ones channel
    p[2 * C_OUT:, K * C_OUT] = np.asarray(b2, np.float32)                  # b2 via ones row of im2
    return jnp.asarray(p)


@jax.jit
def temporal_block(x, params):
    """x: (B, C_IN, L) float32, params: packed (P_ROWS, P_COLS) -> (B, C_OUT, L2) float32."""
    f32 = jnp.float32

    # layout glue only (fused around the single pallas launch by jit): lane-dense slab,
    # SEG lanes per sample, spare channel ONES_CH = 1.0 so biases come out of the MXU for free.
    xp = jnp.pad(x.astype(f32),
                 ((0, B_PAD - B), (0, C_IN_P - C_IN), (PAD, SEG - PAD - L)))  # (B_PAD, C_IN_P, SEG)
    xslab = jnp.transpose(xp, (1, 0, 2)).reshape(C_IN_P, NLANE)               # (C_IN_P, 128)
    xslab = xslab.at[ONES_CH, :].set(1.0)

    yslab = pl.pallas_call(
        temporal_block_kernel,
        out_shape=jax.ShapeDtypeStruct((C_OUT, NLANE), f32),
        in_specs=[
            pl.BlockSpec((C_IN_P, NLANE), lambda: (0, 0)),
            pl.BlockSpec((P_ROWS, P_COLS), lambda: (0, 0)),
        ],
        out_specs=pl.BlockSpec((C_OUT, NLANE), lambda: (0, 0)),
    )(xslab, params)

    # unfold the lane-dense slab back to (B, C_OUT, L2); lanes >= L2 in each segment are junk.
    y = jnp.transpose(yslab.reshape(C_OUT, B_PAD, SEG), (1, 0, 2))
    return y[:B, :, :L2]


def _reference(x, w1, b1, w2, b2, wds, bds):
    """Pure-JAX reference mirroring the PyTorch forward (eval mode, no Chomp1d)."""
    dn = ('NCH', 'OIH', 'NCH')

    def conv(inp, w, b, pad, dil):
        y = lax.conv_general_dilated(inp, w, window_strides=(STRIDE,),
                                     padding=[(pad, pad)], rhs_dilation=(dil,),
                                     dimension_numbers=dn,
                                     precision=lax.Precision.HIGHEST)
        return y + b.reshape(1, -1, 1)

    out = jax.nn.relu(conv(x, w1, b1, PAD, DIL))
    out = jax.nn.relu(conv(out, w2, b2, PAD, DIL))
    res = conv(x, wds.reshape(C_OUT, C_IN, 1), bds, 0, 1)
    res = jnp.pad(res, ((0, 0), (0, 0), (0, out.shape[2] - res.shape[2])))
    return jax.nn.relu(out + res)


if __name__ == "__main__":
    key = jax.random.PRNGKey(0)
    kx, k1, kb1, k2, kb2, kd, kbd = jax.random.split(key, 7)

    x = jax.random.normal(kx, (B, C_IN, L), dtype=jnp.float32)
    # deterministic parameter init (scaled normals)
    w1 = 0.2 * jax.random.normal(k1, (C_OUT, C_IN, K), dtype=jnp.float32)
    b1 = 0.1 * jax.random.normal(kb1, (C_OUT,), dtype=jnp.float32)
    w2 = 0.2 * jax.random.normal(k2, (C_OUT, C_OUT, K), dtype=jnp.float32)
    b2 = 0.1 * jax.random.normal(kb2, (C_OUT,), dtype=jnp.float32)
    wds = 0.2 * jax.random.normal(kd, (C_OUT, C_IN), dtype=jnp.float32)
    bds = 0.1 * jax.random.normal(kbd, (C_OUT,), dtype=jnp.float32)

    params = pack_params(w1, b1, w2, b2, wds, bds)   # host-side, once per parameter update

    out = jax.block_until_ready(temporal_block(x, params))
    ref = jax.block_until_ready(_reference(x, w1, b1, w2, b2, wds, bds))

    assert out.shape == (B, C_OUT, L2), out.shape
    np.testing.assert_allclose(np.asarray(out), np.asarray(ref), rtol=1e-5, atol=1e-5)

    print("KERNEL_OK")
</pallas_src>

<mosaic_0001>
module attributes {stable_mosaic.version = 11 : i64} {
  func.func @temporal_block_kernel(%arg0: memref<8x128xf32, #tpu.memory_space<vmem>>, %arg1: memref<24x32xf32, #tpu.memory_space<vmem>>, %arg2: memref<8x128xf32, #tpu.memory_space<vmem>>) attributes {dimension_semantics = [], scalar_prefetch = 0 : i64, scratch_operands = 0 : i64, tpu.core_type = #tpu.core_type<tc>} {
    %c0 = arith.constant 0 : index
    %c0_0 = arith.constant 0 : index
    %0 = vector.load %arg0[%c0, %c0_0] : memref<8x128xf32, #tpu.memory_space<vmem>>, vector<8x128xf32>
    %c0_1 = arith.constant 0 : index
    %c0_2 = arith.constant 0 : index
    %1 = vector.load %arg1[%c0_1, %c0_2] : memref<24x32xf32, #tpu.memory_space<vmem>>, vector<16x32xf32>
    %c16 = arith.constant 16 : index
    %c0_3 = arith.constant 0 : index
    %2 = vector.load %arg1[%c16, %c0_3] : memref<24x32xf32, #tpu.memory_space<vmem>>, vector<8x32xf32>
    %3 = tpu.iota {dimensions = array<i32: 1>} : vector<1x128xi32>
    %c32_i32 = arith.constant 32 : i32
    %c0_i32 = arith.constant 0 : i32
    %4 = arith.cmpi eq, %c32_i32, %c0_i32 : i32
    %c1_i32 = arith.constant 1 : i32
    %5 = arith.select %4, %c1_i32, %c32_i32 : i32
    %6 = vector.broadcast %5 : i32 to vector<1x128xi32>
    %7 = arith.remsi %3, %6 : vector<1x128xi32>
    %c0_i32_4 = arith.constant 0 : i32
    %8 = vector.broadcast %c0_i32_4 : i32 to vector<1x128xi32>
    %9 = arith.cmpi ne, %7, %8 : vector<1x128xi32>
    %c0_i32_5 = arith.constant 0 : i32
    %10 = vector.broadcast %c0_i32_5 : i32 to vector<1x128xi32>
    %11 = arith.cmpi slt, %7, %10 : vector<1x128xi32>
    %c0_i32_6 = arith.constant 0 : i32
    %12 = arith.cmpi slt, %5, %c0_i32_6 : i32
    %13 = vector.broadcast %12 : i1 to vector<1x128xi1>
    %14 = vector.broadcast %13 : vector<1x128xi1> to vector<1x128xi1>
    %15 = arith.xori %11, %14 : vector<1x128xi1>
    %16 = arith.andi %15, %9 : vector<1x128xi1>
    %17 = vector.broadcast %5 : i32 to vector<1x128xi32>
    %18 = arith.addi %7, %17 : vector<1x128xi32>
    %19 = arith.select %16, %18, %7 : vector<1x128xi1>, vector<1x128xi32>
    %c4_i32 = arith.constant 4 : i32
    %20 = vector.broadcast %c4_i32 : i32 to vector<1x128xi32>
    %21 = arith.cmpi sge, %19, %20 : vector<1x128xi32>
    %c24_i32 = arith.constant 24 : i32
    %22 = vector.broadcast %c24_i32 : i32 to vector<1x128xi32>
    %23 = arith.cmpi slt, %19, %22 : vector<1x128xi32>
    %24 = arith.andi %21, %23 : vector<1x128xi1>
    %c16_i32 = arith.constant 16 : i32
    %25 = vector.broadcast %c16_i32 : i32 to vector<1x128xi32>
    %26 = arith.cmpi slt, %19, %25 : vector<1x128xi32>
    %27 = tpu.iota {dimensions = array<i32: 0>} : vector<8x128xi32>
    %c0_i32_7 = arith.constant 0 : i32
    %28 = vector.broadcast %c0_i32_7 : i32 to vector<8x128xi32>
    %29 = arith.cmpi eq, %27, %28 : vector<8x128xi32>
    %cst = arith.constant 1.000000e+00 : f32
    %cst_8 = arith.constant 0.000000e+00 : f32
    %30 = vector.broadcast %cst : f32 to vector<8x128xf32>
    %31 = vector.broadcast %cst_8 : f32 to vector<8x128xf32>
    %32 = arith.select %29, %30, %31 : vector<8x128xi1>, vector<8x128xf32>
    %c4_i32_9 = arith.constant 4 : i32
    %33 = tpu.dynamic_rotate %0 by %c4_i32_9 dim 1 : vector<8x128xf32>, i32 -> vector<8x128xf32>
    %c2_i32 = arith.constant 2 : i32
    %34 = tpu.dynamic_rotate %0 by %c2_i32 dim 1 : vector<8x128xf32>, i32 -> vector<8x128xf32>
    %c124_i32 = arith.constant 124 : i32
    %35 = tpu.dynamic_rotate %0 by %c124_i32 dim 1 : vector<8x128xf32>, i32 -> vector<8x128xf32>
    %36 = tpu.concatenate %33, %34, %0, %35 in 0 : vector<8x128xf32>, vector<8x128xf32>, vector<8x128xf32>, vector<8x128xf32> -> vector<32x128xf32>
    %cst_10 = arith.constant dense<0.000000e+00> : vector<16x128xf32>
    %37 = tpu.matmul %1, %36, %cst_10 {dimension_numbers = #tpu.dot_dimension_numbers<[1], [0], [0], [1], [0, 0, 1, 1], [], []>} : vector<16x32xf32>, vector<32x128xf32>, vector<16x128xf32> -> vector<16x128xf32>
    %38 = vector.extract_strided_slice %37 {offsets = [0, 0], sizes = [8, 128], strides = [1, 1]} : vector<16x128xf32> to vector<8x128xf32>
    %cst_11 = arith.constant 0.000000e+00 : f32
    %39 = vector.broadcast %cst_11 : f32 to vector<8x128xf32>
    %40 = arith.maximumf %38, %39 : vector<8x128xf32>
    %cst_12 = arith.constant 0.000000e+00 : f32
    %41 = vector.shape_cast %24 : vector<1x128xi1> to vector<1x128xi1>
    %42 = vector.broadcast %41 : vector<1x128xi1> to vector<8x128xi1>
    %43 = vector.broadcast %cst_12 : f32 to vector<8x128xf32>
    %44 = arith.select %42, %40, %43 : vector<8x128xi1>, vector<8x128xf32>
    %45 = vector.extract_strided_slice %37 {offsets = [8, 0], sizes = [8, 128], strides = [1, 1]} : vector<16x128xf32> to vector<8x128xf32>
    %cst_13 = arith.constant 0.000000e+00 : f32
    %46 = vector.shape_cast %26 : vector<1x128xi1> to vector<1x128xi1>
    %47 = vector.broadcast %46 : vector<1x128xi1> to vector<8x128xi1>
    %48 = vector.broadcast %cst_13 : f32 to vector<8x128xf32>
    %49 = arith.select %47, %45, %48 : vector<8x128xi1>, vector<8x128xf32>
    %c126_i32 = arith.constant 126 : i32
    %50 = tpu.dynamic_rotate %44 by %c126_i32 dim 1 : vector<8x128xf32>, i32 -> vector<8x128xf32>
    %c124_i32_14 = arith.constant 124 : i32
    %51 = tpu.dynamic_rotate %44 by %c124_i32_14 dim 1 : vector<8x128xf32>, i32 -> vector<8x128xf32>
    %52 = tpu.concatenate %44, %50, %51, %32 in 0 : vector<8x128xf32>, vector<8x128xf32>, vector<8x128xf32>, vector<8x128xf32> -> vector<32x128xf32>
    %cst_15 = arith.constant dense<0.000000e+00> : vector<8x128xf32>
    %53 = tpu.matmul %2, %52, %cst_15 {dimension_numbers = #tpu.dot_dimension_numbers<[1], [0], [0], [1], [0, 0, 1, 1], [], []>} : vector<8x32xf32>, vector<32x128xf32>, vector<8x128xf32> -> vector<8x128xf32>
    %cst_16 = arith.constant 0.000000e+00 : f32
    %54 = vector.broadcast %cst_16 : f32 to vector<8x128xf32>
    %55 = arith.maximumf %53, %54 : vector<8x128xf32>
    %56 = arith.addf %55, %49 : vector<8x128xf32>
    %cst_17 = arith.constant 0.000000e+00 : f32
    %57 = vector.broadcast %cst_17 : f32 to vector<8x128xf32>
    %58 = arith.maximumf %56, %57 : vector<8x128xf32>
    %c0_18 = arith.constant 0 : index
    %c0_19 = arith.constant 0 : index
    %59 = vector.load %arg2[%c0_18, %c0_19] : memref<8x128xf32, #tpu.memory_space<vmem>>, vector<8x128xf32>
    tpu.vector_store %arg2[%c0_18, %c0_19], %58 {strides = array<i32>} : memref<8x128xf32, #tpu.memory_space<vmem>>, vector<8x128xf32>,
    return
  }
}

</mosaic_0001>

<llo_original>
// kernel: temporal_block.1
$region0: #{temporal_block.1}
  #allocation0 [shape = 'u32[]', space=smem, size = 0x4, offset = 0x4, fixed_abs, tag = 'smem constant byte address 0x4 - core index']
  #allocation1 [shape = 'u32[144,128]{1,0:T(1,128)}', space=vmem, size = 0x12000, scoped, tag = 'internal scratch']
  %s0 = inlined_call_operand.vmem [shape: f32[8,128], index: 0, kind: input, shape index: {}]
  %s1 = inlined_call_operand.vmem [shape: f32[24,32], index: 1, kind: input, shape index: {}]
  %s2 = inlined_call_operand.vmem [shape: f32[8,128], index: 2, kind: output, shape index: {}]
  %s3 = sld [smem:[#allocation0]]
  $region18: #{temporal_block.1} parent=0
    _
  %s5 = ssub.s32 1, %s3
  %s6 = scalar_select 0, %s5, %s3
  // Predicated region
  $region2: #{temporal_block.1} parent=0 // pred_check
    _
  $region3: #{temporal_block.1} parent=0 // pred_check_branch
    %8 = sbr.rel (0) target = $region5
  $region4: #{temporal_block.1} parent=0 // pred_region
    _
  $region5: #{temporal_block.1} parent=0 // pred_fallthru
    _
  // Predicated region
  $region6: #{temporal_block.1} parent=0 // pred_check
    _
  $region7: #{temporal_block.1} parent=0 // pred_check_branch
    %10 = sbr.rel (0) target = $region9
  $region8: #{temporal_block.1} parent=0 // pred_region
    _
  $region9: #{temporal_block.1} parent=0 // pred_fallthru
    _
  %v11 = vld [vmem:[%s0] sm:$0xff]
  %v12 = vld [vmem:[%s1] sm:$0xff]
  %v13 = vld [vmem:[%s1 + $0x8] sm:$0xff]
  %v14 = vld [vmem:[%s1 + $0x10] sm:$0xff]
  %v15 = vlaneseq
  %v16 = vand.u32 %v15, 127
  %vm17 = vcmp.lt.s32.totalorder %v16, 0
  %v18 = vsub.s32 0, %v16
  %v19 = vsel %vm17, %v18, %v16
  %v20 = vshrl.u32 %v19, 5
  %v21 = vand.u32 %v19, 31
  %v22 = vsub.s32 0, %v21
  %v23 = vsel %vm17, %v22, %v21
  %vm24 = vcmp.ne.s32.totalorder %v23, 0
  %vm25 = vcmp.lt.s32.totalorder %v23, 0
  %vm26 = vmand %vm25, %vm24
  %v27 = vadd.s32 %v23, 32
  %v28 = vsel %vm26, %v27, %v23
  %vm29 = vcmp.ge.s32.totalorder %v28, 4
  %vm30 = vcmp.lt.s32.totalorder %v28, 24
  %vm31 = vmand %vm29, %vm30
  %vm32 = vcmp.lt.s32.totalorder %v28, 16
  %v33 = vlaneseq
  %v34 = vshrl.u32 %v33, 7
  %vm35 = vcmp.eq.s32.totalorder %v34, 0
  %v36 = vsel %vm35, 1.0, 0.0
  %37 = vrot.lane.b32.xlu0 %v11, 4
  %v38 = vpop.permute.xlu0 %37
  %39 = vrot.lane.b32.xlu0 %v11, 2
  %v40 = vpop.permute.xlu0 %39
  %41 = vrot.lane.b32.xlu0 %v11, 124
  %v42 = vpop.permute.xlu0 %41
  %vm43 = vcmask 261120
  %v45 = vsel %vm43, %v12, 0
  %v48 = vsel %vm43, %v13, 0
  %50 = vmatprep.subr.mxu0 0.0
  %51 = vmatpush1.msra.mxu0 %v38
  %52 = vmatprep.subr.mxu0 0.0
  %53 = vmatpush1.msra.mxu0 %v40
  %54 = vmatprep.subr.mxu0 0.0
  %55 = vmatpush1.msra.mxu0 %v11
  %56 = vmatprep.subr.mxu0 0.0
  %57 = vmatpush1.msra.mxu0 %v42
  %58 = vmatprep.subr.mxu0 0.0
  %59 = vmatpush1.msra.mxu0 0.0
  %60 = vmatprep.subr.mxu0 0.0
  %61 = vmatpush1.msra.mxu0 0.0
  %62 = vmatprep.subr.mxu0 0.0
  %63 = vmatpush1.msra.mxu0 0.0
  %64 = vmatprep.subr.mxu0 0.0
  %65 = vmatpush1.msra.mxu0 0.0
  %66 = vmatprep.subr.mxu0 0.0
  %67 = vmatpush1.msra.mxu0 0.0
  %68 = vmatprep.subr.mxu0 0.0
  %69 = vmatpush1.msra.mxu0 0.0
  %70 = vmatprep.subr.mxu0 0.0
  %71 = vmatpush1.msra.mxu0 0.0
  %72 = vmatprep.subr.mxu0 0.0
  %73 = vmatpush1.msra.mxu0 0.0
  %74 = vmatprep.subr.mxu0 0.0
  %75 = vmatpush1.msra.mxu0 0.0
  %76 = vmatprep.subr.mxu0 0.0
  %77 = vmatpush1.msra.mxu0 0.0
  %78 = vmatprep.subr.mxu0 0.0
  %79 = vmatpush1.msra.mxu0 0.0
  %80 = vmatprep.subr.mxu0 0.0
  %81 = vmatpush1.msra.mxu0 0.0
  %82 = vmatprep.subr.mxu0 0.0
  %83 = vmatpush1.msra.mxu0 0.0
  %84 = vmatprep.subr.mxu0 0.0
  %85 = vmatpush1.msra.mxu0 0.0
  %86 = vmatprep.subr.mxu0 0.0
  %87 = vmatpush1.msra.mxu0 0.0
  %88 = vmatprep.subr.mxu0 0.0
  %89 = vmatpush1.msra.mxu0 0.0
  %90 = vmatprep.subr.mxu0 0.0
  %91 = vmatpush1.msra.mxu0 0.0
  %92 = vmatprep.subr.mxu0 0.0
  %93 = vmatpush1.msra.mxu0 0.0
  %94 = vmatprep.subr.mxu0 0.0
  %95 = vmatpush1.msra.mxu0 0.0
  %96 = vmatprep.subr.mxu0 0.0
  %97 = vmatpush1.msra.mxu0 0.0
  %98 = vmatprep.subr.mxu0 0.0
  %99 = vmatpush1.msra.mxu0 0.0
  %100 = vmatprep.subr.mxu0 0.0
  %101 = vmatpush1.msra.mxu0 0.0
  %102 = vmatprep.subr.mxu0 0.0
  %103 = vmatpush1.msra.mxu0 0.0
  %104 = vmatprep.subr.mxu0 0.0
  %105 = vmatpush1.msra.mxu0 0.0
  %106 = vmatprep.subr.mxu0 0.0
  %107 = vmatpush1.msra.mxu0 0.0
  %108 = vmatprep.subr.mxu0 0.0
  %109 = vmatpush1.msra.mxu0 0.0
  %110 = vmatprep.subr.mxu0 0.0
  %111 = vmatpush1.msra.mxu0 0.0
  %112 = vmatprep.subr.mxu0 0.0
  %113 = vmatpush1.msra.mxu0 0.0
  %114 = vmatprep.mubr.f32.mxu0 0.0
  %115 = vmatmul.mubr.f32.gmra.mrb[0].mxu0 %v45
  %v116 = vpop.f32.mrb[0].mxu0
  %v117 = vadd.f32 0.0, %v116
  %v118 = vpop.f32.mrb[0].mxu0
  %119 = vmatprep.mubr.f32.mxu0 0.0
  %120 = vmatmul.mubr.f32.gmra.mrb[0].mxu0 %v48
  %v121 = vpop.f32.mrb[0].mxu0
  %v122 = vadd.f32 0.0, %v121
  %v123 = vpop.f32.mrb[0].mxu0
  %124 = vdwg.mxu0
  %v125 = vmax.f32 %v117, 0.0
  %v126 = vsel %vm31, 1, 0
  %vm127 = vcmp.eq.s32.totalorder %v126, 1
  %v128 = vsel %vm127, %v125, 0.0
  %v129 = vsel %vm32, 1, 0
  %vm130 = vcmp.eq.s32.totalorder %v129, 1
  %v131 = vsel %vm130, %v122, 0.0
  %132 = vrot.lane.b32.xlu0 %v128, 126
  %v133 = vpop.permute.xlu0 %132
  %134 = vrot.lane.b32.xlu0 %v128, 124
  %v135 = vpop.permute.xlu0 %134
  %v137 = vsel %vm43, %v14, 0
  %139 = vmatprep.subr.mxu0 0.0
  %140 = vmatpush1.msra.mxu0 %v128
  %141 = vmatprep.subr.mxu0 0.0
  %142 = vmatpush1.msra.mxu0 %v133
  %143 = vmatprep.subr.mxu0 0.0
  %144 = vmatpush1.msra.mxu0 %v135
  %145 = vmatprep.subr.mxu0 0.0
  %146 = vmatpush1.msra.mxu0 %v36
  %147 = vmatprep.subr.mxu0 0.0
  %148 = vmatpush1.msra.mxu0 0.0
  %149 = vmatprep.subr.mxu0 0.0
  %150 = vmatpush1.msra.mxu0 0.0
  %151 = vmatprep.subr.mxu0 0.0
  %152 = vmatpush1.msra.mxu0 0.0
  %153 = vmatprep.subr.mxu0 0.0
  %154 = vmatpush1.msra.mxu0 0.0
  %155 = vmatprep.subr.mxu0 0.0
  %156 = vmatpush1.msra.mxu0 0.0
  %157 = vmatprep.subr.mxu0 0.0
  %158 = vmatpush1.msra.mxu0 0.0
  %159 = vmatprep.subr.mxu0 0.0
  %160 = vmatpush1.msra.mxu0 0.0
  %161 = vmatprep.subr.mxu0 0.0
  %162 = vmatpush1.msra.mxu0 0.0
  %163 = vmatprep.subr.mxu0 0.0
  %164 = vmatpush1.msra.mxu0 0.0
  %165 = vmatprep.subr.mxu0 0.0
  %166 = vmatpush1.msra.mxu0 0.0
  %167 = vmatprep.subr.mxu0 0.0
  %168 = vmatpush1.msra.mxu0 0.0
  %169 = vmatprep.subr.mxu0 0.0
  %170 = vmatpush1.msra.mxu0 0.0
  %171 = vmatprep.subr.mxu0 0.0
  %172 = vmatpush1.msra.mxu0 0.0
  %173 = vmatprep.subr.mxu0 0.0
  %174 = vmatpush1.msra.mxu0 0.0
  %175 = vmatprep.subr.mxu0 0.0
  %176 = vmatpush1.msra.mxu0 0.0
  %177 = vmatprep.subr.mxu0 0.0
  %178 = vmatpush1.msra.mxu0 0.0
  %179 = vmatprep.subr.mxu0 0.0
  %180 = vmatpush1.msra.mxu0 0.0
  %181 = vmatprep.subr.mxu0 0.0
  %182 = vmatpush1.msra.mxu0 0.0
  %183 = vmatprep.subr.mxu0 0.0
  %184 = vmatpush1.msra.mxu0 0.0
  %185 = vmatprep.subr.mxu0 0.0
  %186 = vmatpush1.msra.mxu0 0.0
  %187 = vmatprep.subr.mxu0 0.0
  %188 = vmatpush1.msra.mxu0 0.0
  %189 = vmatprep.subr.mxu0 0.0
  %190 = vmatpush1.msra.mxu0 0.0
  %191 = vmatprep.subr.mxu0 0.0
  %192 = vmatpush1.msra.mxu0 0.0
  %193 = vmatprep.subr.mxu0 0.0
  %194 = vmatpush1.msra.mxu0 0.0
  %195 = vmatprep.subr.mxu0 0.0
  %196 = vmatpush1.msra.mxu0 0.0
  %197 = vmatprep.subr.mxu0 0.0
  %198 = vmatpush1.msra.mxu0 0.0
  %199 = vmatprep.subr.mxu0 0.0
  %200 = vmatpush1.msra.mxu0 0.0
  %201 = vmatprep.subr.mxu0 0.0
  %202 = vmatpush1.msra.mxu0 0.0
  %203 = vmatprep.mubr.f32.mxu0 0.0
  %204 = vmatmul.mubr.f32.gmra.mrb[0].mxu0 %v137
  %v205 = vpop.f32.mrb[0].mxu0
  %v206 = vadd.f32 0.0, %v205
  %v207 = vpop.f32.mrb[0].mxu0
  %208 = vdwg.mxu0
  %v209 = vmax.f32 %v206, 0.0
  %v210 = vadd.f32 %v209, %v131
  %v211 = vmax.f32 %v210, 0.0
  %212 = vst [vmem:[%s2] sm:$0xff] %v211
  // Predicated region
  $region10: #{temporal_block.1} parent=0 // pred_check
    _
  $region11: #{temporal_block.1} parent=0 // pred_check_branch
    %214 = sbr.rel (0) target = $region13
  $region12: #{temporal_block.1} parent=0 // pred_region
    _
  $region13: #{temporal_block.1} parent=0 // pred_fallthru
    _
  // Predicated region
  $region14: #{temporal_block.1} parent=0 // pred_check
    _
  $region15: #{temporal_block.1} parent=0 // pred_check_branch
    %216 = sbr.rel (0) target = $region17
  $region16: #{temporal_block.1} parent=0 // pred_region
    _
  $region17: #{temporal_block.1} parent=0 // pred_fallthru
    _

</llo_original>
